<compile_context>
chip_gen: v7x
topology: tpu7x:2x2x1
jax: 0.10.0
libtpu: 0.0.40
codegen_flags: <defaults>
</compile_context>

<pallas_src>
import functools

import jax
import jax.numpy as jnp
from jax import lax
from jax.experimental import pallas as pl
from jax.experimental.pallas import tpu as pltpu

BN_EPS = 1e-5


def _round_up(x, m):
    return (x + m - 1) // m * m


def _bn_relu(h, g, be, b_real, row_mask):
    """Fused training-mode BatchNorm1d + ReLU on a (B_pad, F) f32 block.

    Two-pass statistics: padded rows of `h` are zero (no bias was added), so
    the sum-based mean is exact; the centered second pass is masked so padded
    rows do not pollute the variance.
    """
    inv_b = 1.0 / b_real
    mean = jnp.sum(h, axis=0, keepdims=True) * inv_b
    centered = h - mean
    cm = centered if row_mask is None else centered * row_mask
    var = jnp.sum(cm * cm, axis=0, keepdims=True) * inv_b      # biased variance
    scale = g * lax.rsqrt(var + BN_EPS)                        # EUP slot
    return jnp.maximum(centered * scale + be, 0.0)


def part_decoder_kernel(*refs, b_real, quantized):
    if quantized:
        (x_ref, w1_ref, g1_ref, be1_ref, w2_ref, g2_ref, be2_ref,
         w3_ref, w3s_ref, b3_ref, o_ref, h2_ref) = refs
    else:
        (x_ref, w1_ref, g1_ref, be1_ref, w2_ref, g2_ref, be2_ref,
         w3_ref, b3_ref, o_ref, h2_ref) = refs
        w3s_ref = None

    b_pad = x_ref.shape[0]
    if b_pad != b_real:
        row_mask = (lax.broadcasted_iota(jnp.int32, (b_pad, 1), 0)
                    < b_real).astype(jnp.float32)
    else:
        row_mask = None

    # Trunk depends only on the batch, not on the output-column tile: compute
    # it once per TensorCore (parallel axis 0) at the first step of its
    # sequential axis and cache the bf16 activations in VMEM scratch.  The
    # duplicated work on v7x is two tiny (b_pad,F)x(F,F) matmuls per core.
    @pl.when(pl.program_id(1) == 0)
    def _():
        # NOTE: mlp1/mlp2 biases are mathematically cancelled by training-mode
        # BN (mean subtraction), so they are not passed in / added here.
        h = jnp.dot(x_ref[...], w1_ref[...],
                    preferred_element_type=jnp.float32)
        h = _bn_relu(h, g1_ref[...], be1_ref[...], b_real, row_mask)
        if row_mask is not None:
            h = h * row_mask            # keep layer-2 batch statistics exact
        h = jnp.dot(h.astype(jnp.bfloat16), w2_ref[...],
                    preferred_element_type=jnp.float32)
        h = _bn_relu(h, g2_ref[...], be2_ref[...], b_real, row_mask)
        h2_ref[...] = h.astype(jnp.bfloat16)

    # mlp3: one lane-aligned column tile per grid step (w3 DMA double-buffered
    # and overlapped with the per-tile matmul by the BlockSpec pipeline).
    w3 = w3_ref[...]
    if quantized:
        w3 = w3.astype(jnp.bfloat16)    # int8 -> bf16 dequant (exact values)
    acc = jnp.dot(h2_ref[...], w3, preferred_element_type=jnp.float32)
    if quantized:
        acc = acc * w3s_ref[...]        # fold per-column scale into epilogue
    o_ref[...] = (acc + b3_ref[...]).astype(o_ref.dtype)


def _choose_col_tiling(out_dim, tn_max):
    """Pick (out_pad, tn, n_par, n_tiles_per_core).

    out_pad is only the 128-lane padding (decoupled from tn -> no wasted
    zero-column work); tn is the largest 128-multiple divisor of out_pad under
    the cap, preferring a split into two equal halves (n_par=2) so v7x's two
    TensorCores both work whenever there is more than one tile anyway.
    """
    out_pad = _round_up(out_dim, 128)
    m = out_pad // 128
    d_cap = max(1, min(m, tn_max // 128))
    d0 = max(d for d in range(1, d_cap + 1) if m % d == 0)
    n_total = m // d0
    if n_total == 1:
        return out_pad, 128 * d0, 1, 1                 # single grid step
    if n_total % 2 == 0:
        return out_pad, 128 * d0, 2, n_total // 2
    even = [d for d in range(1, d_cap + 1) if m % d == 0 and (m // d) % 2 == 0]
    if even:
        d = max(even)
        return out_pad, 128 * d, 2, (m // d) // 2
    return out_pad, 128 * d0, 1, n_total


def part_decoder_forward(net, params, num_point, *, tn_max=2048,
                         w3_quant=None, out_dtype=jnp.float32):
    """net: (B, feat_len) float32 -> (B, num_point, 3).

    Perf note: the dominant mlp3 phase has arithmetic intensity ~B flops/byte,
    so batch several decoder invocations into one (B_total, feat_len) call
    before anything else.  w3_quant="int8" halves the dominant w3 HBM stream
    (per-column scales, dot stays bf16 so it works on v5e/v6e/v7x alike);
    out_dtype=jnp.bfloat16 halves the output writeback if the consumer allows.
    """
    B, F = net.shape
    out_dim = num_point * 3
    b_pad = _round_up(B, 16)          # dense packed bf16 LHS tile (16 sublanes)
    out_pad, tn, n_par, n_tpc = _choose_col_tiling(out_dim, tn_max)

    x = jnp.pad(net, ((0, b_pad - B), (0, 0))).astype(jnp.bfloat16)
    w1 = params["w1"].astype(jnp.bfloat16)
    w2 = params["w2"].astype(jnp.bfloat16)
    w3f = jnp.pad(params["w3"], ((0, 0), (0, out_pad - out_dim)))
    b3 = jnp.pad(params["b3"], ((0, 0), (0, out_pad - out_dim)))

    quantized = (w3_quant == "int8")
    if quantized:
        amax = jnp.max(jnp.abs(w3f), axis=0, keepdims=True)
        w3s = jnp.where(amax > 0, amax / 127.0, 1.0)
        w3 = jnp.clip(jnp.round(w3f / w3s), -127, 127).astype(jnp.int8)
    else:
        w3 = w3f.astype(jnp.bfloat16)

    def const_map(i, j):
        return (0, 0)

    def col_map(i, j):
        return (0, i * n_tpc + j)

    def full(shape):
        # TODO(synk): pipeline_mode=pl.Buffered(1) on these grid-invariant
        # blocks would drop their unused second pipeline buffer (relevant for
        # v7x's 64 MiB VMEM once feat_len is large); left at the default to
        # stay on the well-trodden lowering path at these shapes.
        return pl.BlockSpec(shape, const_map)

    in_specs = [
        full((b_pad, F)),                        # x (bf16)
        full((F, F)),                            # w1 (bf16)
        full((1, F)),                            # bn1 gamma
        full((1, F)),                            # bn1 beta
        full((F, F)),                            # w2 (bf16)
        full((1, F)),                            # bn2 gamma
        full((1, F)),                            # bn2 beta
        pl.BlockSpec((F, tn), col_map),          # w3 column tile (bf16 / int8)
    ]
    args = [x, w1, params["g1"], params["be1"],
            w2, params["g2"], params["be2"], w3]
    if quantized:
        in_specs.append(pl.BlockSpec((1, tn), col_map))   # per-column scale
        args.append(w3s)
    in_specs.append(pl.BlockSpec((1, tn), col_map))       # b3 column tile
    args.append(b3)

    w3_bytes = w3.size * (1 if quantized else 2)
    flops = 2 * b_pad * F * (2 * F + out_pad)
    bytes_accessed = (x.size * 2 + (w1.size + w2.size) * 2 + w3_bytes
                      + 4 * (4 * F + 2 * out_pad)
                      + b_pad * out_pad * jnp.dtype(out_dtype).itemsize)

    flat = pl.pallas_call(
        functools.partial(part_decoder_kernel, b_real=B, quantized=quantized),
        out_shape=jax.ShapeDtypeStruct((b_pad, out_pad), out_dtype),
        grid_spec=pltpu.PrefetchScalarGridSpec(
            num_scalar_prefetch=0,
            grid=(n_par, n_tpc),
            in_specs=in_specs,
            out_specs=pl.BlockSpec((b_pad, tn), col_map),
            scratch_shapes=[pltpu.VMEM((b_pad, F), jnp.bfloat16)],  # h2 cache
        ),
        compiler_params=pltpu.CompilerParams(
            # Axis 0 shards the two column-tile halves across v7x's two
            # TensorCores; axis 1 is sequential because the h2 scratch is
            # written at its first step and reused by every later tile.
            dimension_semantics=("parallel", "arbitrary"),
        ),
        cost_estimate=pl.CostEstimate(
            flops=flops, transcendentals=2 * F, bytes_accessed=bytes_accessed),
    )(*args)

    return flat[:B, :out_dim].reshape(-1, num_point, 3)


def init_params(key, feat_len, num_point):
    ks = jax.random.split(key, 6)
    out_dim = num_point * 3
    # Linear weights stored pre-transposed: (in_features, out_features).
    return {
        "w1": jax.random.normal(ks[0], (feat_len, feat_len), jnp.float32) * 0.1,
        "b1": jax.random.normal(ks[1], (1, feat_len), jnp.float32) * 0.1,
        "g1": jnp.ones((1, feat_len), jnp.float32),
        "be1": jnp.zeros((1, feat_len), jnp.float32),
        "w2": jax.random.normal(ks[2], (feat_len, feat_len), jnp.float32) * 0.1,
        "b2": jax.random.normal(ks[3], (1, feat_len), jnp.float32) * 0.1,
        "g2": jnp.ones((1, feat_len), jnp.float32),
        "be2": jnp.zeros((1, feat_len), jnp.float32),
        "w3": jax.random.normal(ks[4], (feat_len, out_dim), jnp.float32) * 0.1,
        "b3": jax.random.normal(ks[5], (1, out_dim), jnp.float32) * 0.1,
    }


def reference_forward(net, params, num_point, matmul_dtype=jnp.float32):
    """Pure-JAX reference mirroring the PyTorch forward (training-mode BN).

    Keeps the b1/b2 bias adds (they cancel through BN).  `matmul_dtype`
    optionally matches the kernel's bf16 matmul-input rounding.
    """
    def mm(a, b):
        return jnp.dot(a.astype(matmul_dtype), b.astype(matmul_dtype),
                       preferred_element_type=jnp.float32)

    def bn_relu(h, g, be):
        m = jnp.mean(h, axis=0, keepdims=True)
        v = jnp.mean((h - m) ** 2, axis=0, keepdims=True)
        return jnp.maximum((h - m) / jnp.sqrt(v + BN_EPS) * g + be, 0.0)

    h = bn_relu(mm(net, params["w1"]) + params["b1"],
                params["g1"], params["be1"])
    h = bn_relu(mm(h, params["w2"]) + params["b2"],
                params["g2"], params["be2"])
    out = mm(h, params["w3"]) + params["b3"]
    return out.reshape(-1, num_point, 3)


if __name__ == "__main__":
    feat_len = 128
    num_point = 170     # out_dim = 510 -> 512 padded lanes -> single column tile
    batch = 4           # padded to 16 sublanes inside the wrapper

    key = jax.random.PRNGKey(0)
    k_x, k_p = jax.random.split(key)
    net = jax.random.normal(k_x, (batch, feat_len), jnp.float32)
    params = init_params(k_p, feat_len, num_point)

    out = jax.block_until_ready(part_decoder_forward(net, params, num_point))
    assert out.shape == (batch, num_point, 3)

    # Numerics-matched reference (same bf16 matmul-input rounding): tight.
    ref_bf16 = reference_forward(net, params, num_point,
                                 matmul_dtype=jnp.bfloat16)
    assert jnp.allclose(out, ref_bf16, atol=2e-2, rtol=2e-2), \
        float(jnp.max(jnp.abs(out - ref_bf16)))

    # Full-f32 PyTorch-equivalent reference: looser bound for bf16 matmuls.
    ref_f32 = reference_forward(net, params, num_point)
    assert jnp.allclose(out, ref_f32, atol=1.5e-1, rtol=1.5e-1), \
        float(jnp.max(jnp.abs(out - ref_f32)))

    # Optional int8-compressed w3 (halves the dominant HBM stream on all gens).
    out_q = jax.block_until_ready(
        part_decoder_forward(net, params, num_point, w3_quant="int8"))
    assert out_q.shape == (batch, num_point, 3)
    assert jnp.allclose(out_q, ref_f32, atol=2.5e-1, rtol=2.5e-1), \
        float(jnp.max(jnp.abs(out_q - ref_f32)))

    print("KERNEL_OK")
</pallas_src>

<mosaic_0001>
module attributes {stable_mosaic.version = 11 : i64} {
  func.func @part_decoder_kernel(%arg0: i32, %arg1: i32, %arg2: memref<16x128xbf16, #tpu.memory_space<vmem>>, %arg3: memref<128x128xbf16, #tpu.memory_space<vmem>>, %arg4: memref<1x128xf32, #tpu.memory_space<vmem>>, %arg5: memref<1x128xf32, #tpu.memory_space<vmem>>, %arg6: memref<128x128xbf16, #tpu.memory_space<vmem>>, %arg7: memref<1x128xf32, #tpu.memory_space<vmem>>, %arg8: memref<1x128xf32, #tpu.memory_space<vmem>>, %arg9: memref<128x512xbf16, #tpu.memory_space<vmem>>, %arg10: memref<1x512xf32, #tpu.memory_space<vmem>>, %arg11: memref<16x512xf32, #tpu.memory_space<vmem>>, %arg12: memref<16x128xbf16, #tpu.memory_space<vmem>>) attributes {dimension_semantics = [#tpu.dimension_semantics<parallel>, #tpu.dimension_semantics<arbitrary>], iteration_bounds = array<i64: 1, 1>, scalar_prefetch = 0 : i64, scratch_operands = 1 : i64, tpu.core_type = #tpu.core_type<tc>, window_params = [{pipeline_mode = #tpu.pipeline_mode<synchronous>, transform_indices = @transform_0, window_bounds = array<i64: 16, 128>}, {pipeline_mode = #tpu.pipeline_mode<synchronous>, transform_indices = @transform_1, window_bounds = array<i64: 128, 128>}, {pipeline_mode = #tpu.pipeline_mode<synchronous>, transform_indices = @transform_2, window_bounds = array<i64: 1, 128>}, {pipeline_mode = #tpu.pipeline_mode<synchronous>, transform_indices = @transform_3, window_bounds = array<i64: 1, 128>}, {pipeline_mode = #tpu.pipeline_mode<synchronous>, transform_indices = @transform_4, window_bounds = array<i64: 128, 128>}, {pipeline_mode = #tpu.pipeline_mode<synchronous>, transform_indices = @transform_5, window_bounds = array<i64: 1, 128>}, {pipeline_mode = #tpu.pipeline_mode<synchronous>, transform_indices = @transform_6, window_bounds = array<i64: 1, 128>}, {transform_indices = @transform_7, window_bounds = array<i64: 128, 512>}, {transform_indices = @transform_8, window_bounds = array<i64: 1, 512>}, {transform_indices = @transform_9, window_bounds = array<i64: 16, 512>}]} {
    %0 = tpu.iota {dimensions = array<i32: 0>} : vector<16x1xi32>
    %c4_i32 = arith.constant 4 : i32
    %1 = vector.broadcast %c4_i32 : i32 to vector<16x1xi32>
    %2 = arith.cmpi slt, %0, %1 : vector<16x1xi32>
    %3 = arith.extui %2 : vector<16x1xi1> to vector<16x1xi32>
    %4 = arith.sitofp %3 : vector<16x1xi32> to vector<16x1xf32>
    %c0_i32 = arith.constant 0 : i32
    %5 = arith.cmpi eq, %arg1, %c0_i32 : i32
    %6 = arith.extui %5 : i1 to i32
    %c0_i32_0 = arith.constant 0 : i32
    %7 = arith.cmpi ne, %6, %c0_i32_0 : i32
    scf.if %7 {
      %c0_8 = arith.constant 0 : index
      %c0_9 = arith.constant 0 : index
      %15 = vector.load %arg2[%c0_8, %c0_9] : memref<16x128xbf16, #tpu.memory_space<vmem>>, vector<16x128xbf16>
      %c0_10 = arith.constant 0 : index
      %c0_11 = arith.constant 0 : index
      %16 = vector.load %arg3[%c0_10, %c0_11] : memref<128x128xbf16, #tpu.memory_space<vmem>>, vector<128x128xbf16>
      %cst_12 = arith.constant dense<0.000000e+00> : vector<16x128xf32>
      %17 = tpu.matmul %15, %16, %cst_12 {dimension_numbers = #tpu.dot_dimension_numbers<[1], [0], [0], [1], [0, 0, 1, 1], [], []>} : vector<16x128xbf16>, vector<128x128xbf16>, vector<16x128xf32> -> vector<16x128xf32>
      %c0_13 = arith.constant 0 : index
      %c0_14 = arith.constant 0 : index
      %18 = vector.load %arg4[%c0_13, %c0_14] : memref<1x128xf32, #tpu.memory_space<vmem>>, vector<1x128xf32>
      %c0_15 = arith.constant 0 : index
      %c0_16 = arith.constant 0 : index
      %19 = vector.load %arg5[%c0_15, %c0_16] : memref<1x128xf32, #tpu.memory_space<vmem>>, vector<1x128xf32>
      %cst_17 = arith.constant dense<0.000000e+00> : vector<128xf32>
      %20 = vector.multi_reduction <add>, %17, %cst_17 [0] : vector<16x128xf32> to vector<128xf32>
      %21 = vector.shape_cast %20 : vector<128xf32> to vector<1x128xf32>
      %cst_18 = arith.constant 2.500000e-01 : f32
      %22 = vector.broadcast %cst_18 : f32 to vector<1x128xf32>
      %23 = arith.mulf %21, %22 : vector<1x128xf32>
      %24 = vector.broadcast %23 : vector<1x128xf32> to vector<16x128xf32>
      %25 = arith.subf %17, %24 : vector<16x128xf32>
      %26 = vector.broadcast %4 : vector<16x1xf32> to vector<16x128xf32>
      %27 = arith.mulf %25, %26 : vector<16x128xf32>
      %28 = arith.mulf %27, %27 : vector<16x128xf32>
      %cst_19 = arith.constant dense<0.000000e+00> : vector<128xf32>
      %29 = vector.multi_reduction <add>, %28, %cst_19 [0] : vector<16x128xf32> to vector<128xf32>
      %30 = vector.shape_cast %29 : vector<128xf32> to vector<1x128xf32>
      %cst_20 = arith.constant 2.500000e-01 : f32
      %31 = vector.broadcast %cst_20 : f32 to vector<1x128xf32>
      %32 = arith.mulf %30, %31 : vector<1x128xf32>
      %cst_21 = arith.constant 9.99999974E-6 : f32
      %33 = vector.broadcast %cst_21 : f32 to vector<1x128xf32>
      %34 = arith.addf %32, %33 : vector<1x128xf32>
      %35 = math.rsqrt %34 : vector<1x128xf32>
      %36 = arith.mulf %18, %35 : vector<1x128xf32>
      %37 = vector.broadcast %36 : vector<1x128xf32> to vector<16x128xf32>
      %38 = arith.mulf %25, %37 : vector<16x128xf32>
      %39 = vector.broadcast %19 : vector<1x128xf32> to vector<16x128xf32>
      %40 = arith.addf %38, %39 : vector<16x128xf32>
      %cst_22 = arith.constant 0.000000e+00 : f32
      %41 = vector.broadcast %cst_22 : f32 to vector<16x128xf32>
      %42 = arith.maximumf %40, %41 : vector<16x128xf32>
      %43 = vector.broadcast %4 : vector<16x1xf32> to vector<16x128xf32>
      %44 = arith.mulf %42, %43 : vector<16x128xf32>
      %45 = arith.truncf %44 : vector<16x128xf32> to vector<16x128xbf16>
      %c0_23 = arith.constant 0 : index
      %c0_24 = arith.constant 0 : index
      %46 = vector.load %arg6[%c0_23, %c0_24] : memref<128x128xbf16, #tpu.memory_space<vmem>>, vector<128x128xbf16>
      %cst_25 = arith.constant dense<0.000000e+00> : vector<16x128xf32>
      %47 = tpu.matmul %45, %46, %cst_25 {dimension_numbers = #tpu.dot_dimension_numbers<[1], [0], [0], [1], [0, 0, 1, 1], [], []>} : vector<16x128xbf16>, vector<128x128xbf16>, vector<16x128xf32> -> vector<16x128xf32>
      %c0_26 = arith.constant 0 : index
      %c0_27 = arith.constant 0 : index
      %48 = vector.load %arg7[%c0_26, %c0_27] : memref<1x128xf32, #tpu.memory_space<vmem>>, vector<1x128xf32>
      %c0_28 = arith.constant 0 : index
      %c0_29 = arith.constant 0 : index
      %49 = vector.load %arg8[%c0_28, %c0_29] : memref<1x128xf32, #tpu.memory_space<vmem>>, vector<1x128xf32>
      %cst_30 = arith.constant dense<0.000000e+00> : vector<128xf32>
      %50 = vector.multi_reduction <add>, %47, %cst_30 [0] : vector<16x128xf32> to vector<128xf32>
      %51 = vector.shape_cast %50 : vector<128xf32> to vector<1x128xf32>
      %cst_31 = arith.constant 2.500000e-01 : f32
      %52 = vector.broadcast %cst_31 : f32 to vector<1x128xf32>
      %53 = arith.mulf %51, %52 : vector<1x128xf32>
      %54 = vector.broadcast %53 : vector<1x128xf32> to vector<16x128xf32>
      %55 = arith.subf %47, %54 : vector<16x128xf32>
      %56 = vector.broadcast %4 : vector<16x1xf32> to vector<16x128xf32>
      %57 = arith.mulf %55, %56 : vector<16x128xf32>
      %58 = arith.mulf %57, %57 : vector<16x128xf32>
      %cst_32 = arith.constant dense<0.000000e+00> : vector<128xf32>
      %59 = vector.multi_reduction <add>, %58, %cst_32 [0] : vector<16x128xf32> to vector<128xf32>
      %60 = vector.shape_cast %59 : vector<128xf32> to vector<1x128xf32>
      %cst_33 = arith.constant 2.500000e-01 : f32
      %61 = vector.broadcast %cst_33 : f32 to vector<1x128xf32>
      %62 = arith.mulf %60, %61 : vector<1x128xf32>
      %cst_34 = arith.constant 9.99999974E-6 : f32
      %63 = vector.broadcast %cst_34 : f32 to vector<1x128xf32>
      %64 = arith.addf %62, %63 : vector<1x128xf32>
      %65 = math.rsqrt %64 : vector<1x128xf32>
      %66 = arith.mulf %48, %65 : vector<1x128xf32>
      %67 = vector.broadcast %66 : vector<1x128xf32> to vector<16x128xf32>
      %68 = arith.mulf %55, %67 : vector<16x128xf32>
      %69 = vector.broadcast %49 : vector<1x128xf32> to vector<16x128xf32>
      %70 = arith.addf %68, %69 : vector<16x128xf32>
      %cst_35 = arith.constant 0.000000e+00 : f32
      %71 = vector.broadcast %cst_35 : f32 to vector<16x128xf32>
      %72 = arith.maximumf %70, %71 : vector<16x128xf32>
      %73 = arith.truncf %72 : vector<16x128xf32> to vector<16x128xbf16>
      %c0_36 = arith.constant 0 : index
      %c0_37 = arith.constant 0 : index
      %74 = vector.load %arg12[%c0_36, %c0_37] : memref<16x128xbf16, #tpu.memory_space<vmem>>, vector<16x128xbf16>
      tpu.vector_store %arg12[%c0_36, %c0_37], %73 {strides = array<i32>} : memref<16x128xbf16, #tpu.memory_space<vmem>>, vector<16x128xbf16>,
    } else {
    }
    %c0 = arith.constant 0 : index
    %c0_1 = arith.constant 0 : index
    %8 = vector.load %arg9[%c0, %c0_1] : memref<128x512xbf16, #tpu.memory_space<vmem>>, vector<128x512xbf16>
    %c0_2 = arith.constant 0 : index
    %c0_3 = arith.constant 0 : index
    %9 = vector.load %arg12[%c0_2, %c0_3] : memref<16x128xbf16, #tpu.memory_space<vmem>>, vector<16x128xbf16>
    %cst = arith.constant dense<0.000000e+00> : vector<16x512xf32>
    %10 = tpu.matmul %9, %8, %cst {dimension_numbers = #tpu.dot_dimension_numbers<[1], [0], [0], [1], [0, 0, 1, 1], [], []>} : vector<16x128xbf16>, vector<128x512xbf16>, vector<16x512xf32> -> vector<16x512xf32>
    %c0_4 = arith.constant 0 : index
    %c0_5 = arith.constant 0 : index
    %11 = vector.load %arg10[%c0_4, %c0_5] : memref<1x512xf32, #tpu.memory_space<vmem>>, vector<1x512xf32>
    %12 = vector.broadcast %11 : vector<1x512xf32> to vector<16x512xf32>
    %13 = arith.addf %10, %12 : vector<16x512xf32>
    %c0_6 = arith.constant 0 : index
    %c0_7 = arith.constant 0 : index
    %14 = vector.load %arg11[%c0_6, %c0_7] : memref<16x512xf32, #tpu.memory_space<vmem>>, vector<16x512xf32>
    tpu.vector_store %arg11[%c0_6, %c0_7], %13 {strides = array<i32>} : memref<16x512xf32, #tpu.memory_space<vmem>>, vector<16x512xf32>,
    return
  }
  func.func @transform_0(%arg0: i32, %arg1: i32) -> (i32, i32) {
    %c0_i32 = arith.constant 0 : i32
    %c0_i32_0 = arith.constant 0 : i32
    %c0_i32_1 = arith.constant 0 : i32
    return %c0_i32, %c0_i32_0 : i32, i32
  }
  func.func @transform_1(%arg0: i32, %arg1: i32) -> (i32, i32) {
    %c0_i32 = arith.constant 0 : i32
    %c0_i32_0 = arith.constant 0 : i32
    %c0_i32_1 = arith.constant 0 : i32
    return %c0_i32, %c0_i32_0 : i32, i32
  }
  func.func @transform_2(%arg0: i32, %arg1: i32) -> (i32, i32) {
    %c0_i32 = arith.constant 0 : i32
    %c0_i32_0 = arith.constant 0 : i32
    %c0_i32_1 = arith.constant 0 : i32
    return %c0_i32, %c0_i32_0 : i32, i32
  }
  func.func @transform_3(%arg0: i32, %arg1: i32) -> (i32, i32) {
    %c0_i32 = arith.constant 0 : i32
    %c0_i32_0 = arith.constant 0 : i32
    %c0_i32_1 = arith.constant 0 : i32
    return %c0_i32, %c0_i32_0 : i32, i32
  }
  func.func @transform_4(%arg0: i32, %arg1: i32) -> (i32, i32) {
    %c0_i32 = arith.constant 0 : i32
    %c0_i32_0 = arith.constant 0 : i32
    %c0_i32_1 = arith.constant 0 : i32
    return %c0_i32, %c0_i32_0 : i32, i32
  }
  func.func @transform_5(%arg0: i32, %arg1: i32) -> (i32, i32) {
    %c0_i32 = arith.constant 0 : i32
    %c0_i32_0 = arith.constant 0 : i32
    %c0_i32_1 = arith.constant 0 : i32
    return %c0_i32, %c0_i32_0 : i32, i32
  }
  func.func @transform_6(%arg0: i32, %arg1: i32) -> (i32, i32) {
    %c0_i32 = arith.constant 0 : i32
    %c0_i32_0 = arith.constant 0 : i32
    %c0_i32_1 = arith.constant 0 : i32
    return %c0_i32, %c0_i32_0 : i32, i32
  }
  func.func @transform_7(%arg0: i32, %arg1: i32) -> (i32, i32) {
    %c1_i32 = arith.constant 1 : i32
    %0 = arith.muli %arg0, %c1_i32 : i32
    %1 = arith.addi %0, %arg1 : i32
    %c0_i32 = arith.constant 0 : i32
    %c0_i32_0 = arith.constant 0 : i32
    return %c0_i32, %1 : i32, i32
  }
  func.func @transform_8(%arg0: i32, %arg1: i32) -> (i32, i32) {
    %c1_i32 = arith.constant 1 : i32
    %0 = arith.muli %arg0, %c1_i32 : i32
    %1 = arith.addi %0, %arg1 : i32
    %c0_i32 = arith.constant 0 : i32
    %c0_i32_0 = arith.constant 0 : i32
    return %c0_i32, %1 : i32, i32
  }
  func.func @transform_9(%arg0: i32, %arg1: i32) -> (i32, i32) {
    %c1_i32 = arith.constant 1 : i32
    %0 = arith.muli %arg0, %c1_i32 : i32
    %1 = arith.addi %0, %arg1 : i32
    %c0_i32 = arith.constant 0 : i32
    %c0_i32_0 = arith.constant 0 : i32
    return %c0_i32, %1 : i32, i32
  }
}

</mosaic_0001>

<llo_original>
// kernel: tpu_custom_call.1
$region0: #{tpu_custom_call.1}
  #allocation0 [shape = 'u32[]', space=smem, size = 0x4, offset = 0x4, fixed_abs, tag = 'smem constant byte address 0x4 - core index']
  #allocation1 [shape = 'u32[144,128]{1,0:T(1,128)}', space=vmem, size = 0x12000, scoped, tag = 'internal scratch']
  #allocation2 [shape = 'bf16[16,128]{1,0:T(16,128)(2,1)}', space=vmem, size = 0x1000, scoped, tag = 'scratch operand']
  %s0 = inlined_call_operand.hbm [shape: bf16[16,128], index: 0, kind: input, shape index: {}]
  %s1 = inlined_call_operand.hbm [shape: bf16[128,128], index: 1, kind: input, shape index: {}]
  %s2 = inlined_call_operand.vmem [shape: f32[1,128], index: 2, kind: input, shape index: {}]
  %s3 = inlined_call_operand.vmem [shape: f32[1,128], index: 3, kind: input, shape index: {}]
  %s4 = inlined_call_operand.hbm [shape: bf16[128,128], index: 4, kind: input, shape index: {}]
  %s5 = inlined_call_operand.vmem [shape: f32[1,128], index: 5, kind: input, shape index: {}]
  %s6 = inlined_call_operand.vmem [shape: f32[1,128], index: 6, kind: input, shape index: {}]
  %s7 = inlined_call_operand.hbm [shape: bf16[128,512], index: 7, kind: input, shape index: {}]
  %s8 = inlined_call_operand.vmem [shape: f32[1,512], index: 8, kind: input, shape index: {}]
  %s9 = inlined_call_operand.hbm [shape: f32[16,512], index: 9, kind: output, shape index: {}]
  %s10 = sld [smem:[#allocation0]]
  $region66: #{tpu_custom_call.1} parent=0
    _
  %s12 = ssub.s32 1, %s10
  %s13 = scalar_select 0, %s12, %s10
  $region1: #{tpu_custom_call.1} parent=0
    #allocation3 [shape = 'u8[4096]{0}', space=vmem, size = 0x1000, scoped, tag = 'input window, operand 0, single buffered']
    #allocation4 [shape = 's32[1]{0}', space=sflag, size = 0x4, scoped, tag = 'scoped memory for tpu_custom_call.1']
    #allocation5 [shape = 's32[1]{0}', space=sflag, size = 0x4, scoped, tag = 'scoped memory for tpu_custom_call.1']
    #allocation6 [shape = 'u8[32768]{0}', space=vmem, size = 0x8000, scoped, tag = 'input window, operand 1, single buffered']
    #allocation7 [shape = 's32[1]{0}', space=sflag, size = 0x4, scoped, tag = 'scoped memory for tpu_custom_call.1']
    #allocation8 [shape = 'u8[32768]{0}', space=vmem, size = 0x8000, scoped, tag = 'input window, operand 4, single buffered']
    #allocation9 [shape = 'u8[131072]{0}', space=vmem, size = 0x20000, scoped, tag = 'input window, operand 7, single buffered']
    #allocation10 [shape = 's32[1]{0}', space=sflag, size = 0x4, scoped, tag = 'scoped memory for tpu_custom_call.1']
    #allocation11 [shape = 'u8[32768]{0}', space=vmem, size = 0x8000, scoped, tag = 'output window, operand 0, single buffered']
    %14 = vsyncpa [#allocation4], 0
    %15 = vsyncpa [#allocation7], 0
    %16 = vsyncpa [#allocation10], 0
    %17 = vsyncpa [#allocation5], 0
    // Predicated region
    $region2: #{tpu_custom_call.1} parent=1 // pred_check
      _
    $region3: #{tpu_custom_call.1} parent=1 // pred_check_branch
      %19 = sbr.rel (0) target = $region5
    $region4: #{tpu_custom_call.1} parent=1 // pred_region
      %s21 = ssub.s32 128, 128
      %22 = vsyncadd [#allocation4], %s21
      %s23 = sshll.u32 [#allocation3], 4
      %s24 = int_to_ptr.vmem [resolvable:$true] %s23
      %29 = dma.hbm_to_vmem [thread:$0]  %s0, 128, %s24, [#allocation4], 64, 64, 4
    $region5: #{tpu_custom_call.1} parent=1 // pred_fallthru
      _
    // Predicated region
    $region6: #{tpu_custom_call.1} parent=1 // pred_check
      _
    $region7: #{tpu_custom_call.1} parent=1 // pred_check_branch
      %31 = sbr.rel (0) target = $region9
    $region8: #{tpu_custom_call.1} parent=1 // pred_region
      %s33 = ssub.s32 1024, 1024
      %34 = vsyncadd [#allocation7], %s33
      %s35 = sshll.u32 [#allocation6], 4
      %s36 = int_to_ptr.vmem [resolvable:$true] %s35
      %41 = dma.hbm_to_vmem [thread:$0]  %s1, 1024, %s36, [#allocation7], 64, 64, 4
    $region9: #{tpu_custom_call.1} parent=1 // pred_fallthru
      _
    // Predicated region
    $region10: #{tpu_custom_call.1} parent=1 // pred_check
      _
    $region11: #{tpu_custom_call.1} parent=1 // pred_check_branch
      %43 = sbr.rel (0) target = $region13
    $region12: #{tpu_custom_call.1} parent=1 // pred_region
      _
    $region13: #{tpu_custom_call.1} parent=1 // pred_fallthru
      _
    // Predicated region
    $region14: #{tpu_custom_call.1} parent=1 // pred_check
      _
    $region15: #{tpu_custom_call.1} parent=1 // pred_check_branch
      %45 = sbr.rel (0) target = $region17
    $region16: #{tpu_custom_call.1} parent=1 // pred_region
      _
    $region17: #{tpu_custom_call.1} parent=1 // pred_fallthru
      _
    // Predicated region
    $region18: #{tpu_custom_call.1} parent=1 // pred_check
      _
    $region19: #{tpu_custom_call.1} parent=1 // pred_check_branch
      %47 = sbr.rel (0) target = $region21
    $region20: #{tpu_custom_call.1} parent=1 // pred_region
      %s49 = ssub.s32 1024, 1024
      %50 = vsyncadd [#allocation7], %s49
      %s51 = sshll.u32 [#allocation8], 4
      %s52 = int_to_ptr.vmem [resolvable:$true] %s51
      %57 = dma.hbm_to_vmem [thread:$0]  %s4, 1024, %s52, [#allocation7], 64, 64, 4
    $region21: #{tpu_custom_call.1} parent=1 // pred_fallthru
      _
    // Predicated region
    $region22: #{tpu_custom_call.1} parent=1 // pred_check
      _
    $region23: #{tpu_custom_call.1} parent=1 // pred_check_branch
      %59 = sbr.rel (0) target = $region25
    $region24: #{tpu_custom_call.1} parent=1 // pred_region
      _
    $region25: #{tpu_custom_call.1} parent=1 // pred_fallthru
      _
    // Predicated region
    $region26: #{tpu_custom_call.1} parent=1 // pred_check
      _
    $region27: #{tpu_custom_call.1} parent=1 // pred_check_branch
      %61 = sbr.rel (0) target = $region29
    $region28: #{tpu_custom_call.1} parent=1 // pred_region
      _
    $region29: #{tpu_custom_call.1} parent=1 // pred_fallthru
      _
    // Predicated region
    $region30: #{tpu_custom_call.1} parent=1 // pred_check
      _
    $region31: #{tpu_custom_call.1} parent=1 // pred_check_branch
      %63 = sbr.rel (0) target = $region33
    $region32: #{tpu_custom_call.1} parent=1 // pred_region
      %s64 = sadd.s32 0, 0
      %s65 = smul.u32 4, %s64
      %s67 = ssub.s32 4096, 4096
      %68 = vsyncadd [#allocation10], %s67
      %s69 = smul.addr %s65, 64
      %s70 = scalar_lea.hbm %s7, %s69
      %s71 = sshll.u32 [#allocation9], 4
      %s72 = int_to_ptr.vmem [resolvable:$true] %s71
      %77 = dma.hbm_to_vmem [thread:$0]  %s70, 4096, %s72, [#allocation10], 256, 256, 16
    $region33: #{tpu_custom_call.1} parent=1 // pred_fallthru
      _
    // Predicated region
    $region34: #{tpu_custom_call.1} parent=1 // pred_check
      _
    $region35: #{tpu_custom_call.1} parent=1 // pred_check_branch
      %79 = sbr.rel (0) target = $region37
    $region36: #{tpu_custom_call.1} parent=1 // pred_region
      %s80 = sadd.s32 0, 0
      %s81 = smul.u32 4, %s80
      %p82 = scmp.lt.s32.totalorder %s81, 3
      %s83 = scalar_select %p82, %s81, 3
      %s84 = scalar_lea.vmem %s8, %s83
      %s85 = sadd.s32 0, 0
      %s86 = smul.u32 4, %s85
    $region37: #{tpu_custom_call.1} parent=1 // pred_fallthru
      _
    // Predicated region
    $region38: #{tpu_custom_call.1} parent=1 // pred_check
      _
    $region39: #{tpu_custom_call.1} parent=1 // pred_check_branch
      %88 = sbr.rel (0) target = $region41
    $region40: #{tpu_custom_call.1} parent=1 // pred_region
      %89 = dma.done [#allocation4], 128
    $region41: #{tpu_custom_call.1} parent=1 // pred_fallthru
      _
    // Predicated region
    $region42: #{tpu_custom_call.1} parent=1 // pred_check
      _
    $region43: #{tpu_custom_call.1} parent=1 // pred_check_branch
      %91 = sbr.rel (0) target = $region45
    $region44: #{tpu_custom_call.1} parent=1 // pred_region
      %92 = dma.done [#allocation7], 1024
    $region45: #{tpu_custom_call.1} parent=1 // pred_fallthru
      _
    // Predicated region
    $region46: #{tpu_custom_call.1} parent=1 // pred_check
      _
    $region47: #{tpu_custom_call.1} parent=1 // pred_check_branch
      %94 = sbr.rel (0) target = $region49
    $region48: #{tpu_custom_call.1} parent=1 // pred_region
      %95 = dma.done [#allocation7], 1024
    $region49: #{tpu_custom_call.1} parent=1 // pred_fallthru
      _
    // Predicated region
    $region50: #{tpu_custom_call.1} parent=1 // pred_check
      _
    $region51: #{tpu_custom_call.1} parent=1 // pred_check_branch
      %97 = sbr.rel (0) target = $region53
    $region52: #{tpu_custom_call.1} parent=1 // pred_region
      %98 = dma.done [#allocation10], 4096
    $region53: #{tpu_custom_call.1} parent=1 // pred_fallthru
      _
    %s99 = sadd.s32 0, 0
    %s100 = smul.u32 4, %s99
    %p101 = scmp.lt.s32.totalorder %s100, 3
    %s102 = scalar_select %p101, %s100, 3
    %s103 = scalar_lea.vmem %s8, %s102
    %s104 = sadd.s32 0, 0
    %s105 = smul.u32 4, %s104
    %s106 = sadd.s32 0, 0
    %s107 = smul.u32 4, %s106
    %p108 = scmp.lt.s32.totalorder %s107, 3
    %s109 = scalar_select %p108, %s107, 3
    %s110 = scalar_lea.vmem %s8, %s109
    %s111 = sadd.s32 0, 0
    %s112 = smul.u32 4, %s111
    %s113 = sadd.s32 0, 0
    %s114 = smul.u32 4, %s113
    %v116 = vlaneseq
    %v117 = vshrl.u32 %v116, 7
    %v118 = vadd.s32 %v117, 8
    %vm119 = vcmp.lt.s32.totalorder %v117, 4
    %vm120 = vcmp.lt.s32.totalorder %v118, 4
    %v121 = vsel %vm119, 1, 0
    %v122 = vsel %vm120, 1, 0
    %v123 = vcvt.s32.f32 %v121
    %v124 = vcvt.s32.f32 %v122
    %p125 = scmp.eq.s32.totalorder 0, 0
    // Predicated region
    $region54: #{tpu_custom_call.1} parent=1 // pred_check
      %p126 = pneg %p125
    $region55: #{tpu_custom_call.1} parent=1 // pred_check_branch
      %128 = sbr.rel (%p126) target = $region57
    $region56: #{tpu_custom_call.1} parent=1 // pred_region
      %v129 = vld [vmem:[#allocation3] sm:$0xf]
      %v130 = vld [vmem:[#allocation3 + $0x4] sm:$0xf]
      %v131 = vld [vmem:[#allocation6] sm:$0xf]
      %v132 = vld [vmem:[#allocation6 + $0x4] sm:$0xf]
      %v133 = vld [vmem:[#allocation6 + $0x8] sm:$0xf]
      %v134 = vld [vmem:[#allocation6 + $0xc] sm:$0xf]
      %v135 = vld [vmem:[#allocation6 + $0x10] sm:$0xf]
      %v136 = vld [vmem:[#allocation6 + $0x14] sm:$0xf]
      %v137 = vld [vmem:[#allocation6 + $0x18] sm:$0xf]
      %v138 = vld [vmem:[#allocation6 + $0x1c] sm:$0xf]
      %v139 = vld [vmem:[#allocation6 + $0x20] sm:$0xf]
      %v140 = vld [vmem:[#allocation6 + $0x24] sm:$0xf]
      %v141 = vld [vmem:[#allocation6 + $0x28] sm:$0xf]
      %v142 = vld [vmem:[#allocation6 + $0x2c] sm:$0xf]
      %v143 = vld [vmem:[#allocation6 + $0x30] sm:$0xf]
      %v144 = vld [vmem:[#allocation6 + $0x34] sm:$0xf]
      %v145 = vld [vmem:[#allocation6 + $0x38] sm:$0xf]
      %v146 = vld [vmem:[#allocation6 + $0x3c] sm:$0xf]
      %v149 = vunpack.c.l.b16 %v129
      %v150 = vunpack.c.l.b16 %v130
      %v151 = vpack.c.b16 %v150, %v149
      %v169 = vunpack.c.l.b16 %v131
      %v170 = vunpack.c.l.b16 %v132
      %v171 = vunpack.c.l.b16 %v133
      %v172 = vunpack.c.l.b16 %v134
      %v173 = vunpack.c.l.b16 %v135
      %v174 = vunpack.c.l.b16 %v136
      %v175 = vunpack.c.l.b16 %v137
      %v176 = vunpack.c.l.b16 %v138
      %v177 = vunpack.c.l.b16 %v139
      %v178 = vunpack.c.l.b16 %v140
      %v179 = vunpack.c.l.b16 %v141
      %v180 = vunpack.c.l.b16 %v142
      %v181 = vunpack.c.l.b16 %v143
      %v182 = vunpack.c.l.b16 %v144
      %v183 = vunpack.c.l.b16 %v145
      %v184 = vunpack.c.l.b16 %v146
      %v185 = vpack.c.b16 %v170, %v169
      %v186 = vpack.c.b16 %v172, %v171
      %v187 = vpack.c.b16 %v174, %v173
      %v188 = vpack.c.b16 %v176, %v175
      %v189 = vpack.c.b16 %v178, %v177
      %v190 = vpack.c.b16 %v180, %v179
      %v191 = vpack.c.b16 %v182, %v181
      %v192 = vpack.c.b16 %v184, %v183
      %201 = vmatprep.subr.bf16.mxu0 0
      %202 = vmatpush1.bf16.msra.mxu0 %v185
      %203 = vmatprep.subr.bf16.mxu0 0
      %204 = vmatpush1.bf16.msra.mxu0 %v186
      %205 = vmatprep.subr.bf16.mxu0 0
      %206 = vmatpush1.bf16.msra.mxu0 %v187
      %207 = vmatprep.subr.bf16.mxu0 0
      %208 = vmatpush1.bf16.msra.mxu0 %v188
      %209 = vmatprep.subr.bf16.mxu0 0
      %210 = vmatpush1.bf16.msra.mxu0 %v189
      %211 = vmatprep.subr.bf16.mxu0 0
      %212 = vmatpush1.bf16.msra.mxu0 %v190
      %213 = vmatprep.subr.bf16.mxu0 0
      %214 = vmatpush1.bf16.msra.mxu0 %v191
      %215 = vmatprep.subr.bf16.mxu0 0
      %216 = vmatpush1.bf16.msra.mxu0 %v192
      %217 = vmatprep.subr.bf16.mxu0 0
      %218 = vmatpush1.bf16.msra.mxu0 0
      %219 = vmatprep.subr.bf16.mxu0 0
      %220 = vmatpush1.bf16.msra.mxu0 0
      %221 = vmatprep.subr.bf16.mxu0 0
      %222 = vmatpush1.bf16.msra.mxu0 0
      %223 = vmatprep.subr.bf16.mxu0 0
      %224 = vmatpush1.bf16.msra.mxu0 0
      %225 = vmatprep.subr.bf16.mxu0 0
      %226 = vmatpush1.bf16.msra.mxu0 0
      %227 = vmatprep.subr.bf16.mxu0 0
      %228 = vmatpush1.bf16.msra.mxu0 0
      %229 = vmatprep.subr.bf16.mxu0 0
      %230 = vmatpush1.bf16.msra.mxu0 0
      %231 = vmatprep.subr.bf16.mxu0 0
      %232 = vmatpush1.bf16.msra.mxu0 0
      %233 = vmatprep.mubr.bf16.mxu0 0
      %234 = vmatmul.mubr.bf16.gmra.mrb[0].mxu0 %v151
      %v235 = vpop.f32.mrb[0].mxu0
      %v236 = vadd.f32 0.0, %v235
      %v237 = vpop.f32.mrb[0].mxu0
      %v238 = vpop.f32.mrb[0].mxu0
      %v239 = vadd.f32 0.0, %v238
      %v240 = vpop.f32.mrb[0].mxu0
      %241 = vdwg.mxu0
      %v242 = vld [vmem:[%s2] sm:$0x1]
      %v243 = vld [vmem:[%s3] sm:$0x1]
      %v244 = vadd.f32 %v236, %v239
      %v245 = vrot.slane %v244, 4
      %v246 = vadd.f32 %v244, %v245
      %v247 = vrot.slane %v246, 2
      %v248 = vadd.f32 %v246, %v247
      %v249 = vrot.slane %v248, 1
      %v250 = vadd.f32 %v248, %v249
      %v251 = vmul.f32 %v250, 0.25
      %v252 = vsub.f32 %v236, %v251
      %v253 = vsub.f32 %v239, %v251
      %v254 = vmul.f32 %v252, %v123
      %v255 = vmul.f32 %v253, %v124
      %v256 = vmul.f32 %v254, %v254
      %v257 = vmul.f32 %v255, %v255
      %v258 = vadd.f32 %v256, %v257
      %v259 = vrot.slane %v258, 4
      %v260 = vadd.f32 %v258, %v259
      %v261 = vrot.slane %v260, 2
      %v262 = vadd.f32 %v260, %v261
      %v263 = vrot.slane %v262, 1
      %v264 = vadd.f32 %v262, %v263
      %v265 = vmul.f32 %v264, 0.25
      %v266 = vadd.f32 %v265, 1e-05
      %v267 = vrsqrt.pop %v266
      %v268 = vmul.f32 %v242, %v267
      %v270 = vlaneseq
      %v271 = vshrl.u32 %v270, 7
      %v272 = vsub.s32 0, %v271
      %v273 = vrot.slane %v268, %v272
      %v275 = vmul.f32 %v252, %v273
      %v276 = vmul.f32 %v253, %v273
      %v278 = vlaneseq
      %v279 = vshrl.u32 %v278, 7
      %v280 = vsub.s32 0, %v279
      %v281 = vrot.slane %v243, %v280
      %v283 = vadd.f32 %v275, %v281
      %v284 = vadd.f32 %v276, %v281
      %v285 = vmax.f32 %v283, 0.0
      %v286 = vmax.f32 %v284, 0.0
      %v287 = vmul.f32 %v285, %v123
      %v288 = vmul.f32 %v286, %v124
      %v289 = vpack.c.bf16 %v288, %v287
      %v290 = vld [vmem:[#allocation8] sm:$0xf]
      %v291 = vld [vmem:[#allocation8 + $0x4] sm:$0xf]
      %v292 = vld [vmem:[#allocation8 + $0x8] sm:$0xf]
      %v293 = vld [vmem:[#allocation8 + $0xc] sm:$0xf]
      %v294 = vld [vmem:[#allocation8 + $0x10] sm:$0xf]
      %v295 = vld [vmem:[#allocation8 + $0x14] sm:$0xf]
      %v296 = vld [vmem:[#allocation8 + $0x18] sm:$0xf]
      %v297 = vld [vmem:[#allocation8 + $0x1c] sm:$0xf]
      %v298 = vld [vmem:[#allocation8 + $0x20] sm:$0xf]
      %v299 = vld [vmem:[#allocation8 + $0x24] sm:$0xf]
      %v300 = vld [vmem:[#allocation8 + $0x28] sm:$0xf]
      %v301 = vld [vmem:[#allocation8 + $0x2c] sm:$0xf]
      %v302 = vld [vmem:[#allocation8 + $0x30] sm:$0xf]
      %v303 = vld [vmem:[#allocation8 + $0x34] sm:$0xf]
      %v304 = vld [vmem:[#allocation8 + $0x38] sm:$0xf]
      %v305 = vld [vmem:[#allocation8 + $0x3c] sm:$0xf]
      %v322 = vunpack.c.l.b16 %v290
      %v323 = vunpack.c.l.b16 %v291
      %v324 = vunpack.c.l.b16 %v292
      %v325 = vunpack.c.l.b16 %v293
      %v326 = vunpack.c.l.b16 %v294
      %v327 = vunpack.c.l.b16 %v295
      %v328 = vunpack.c.l.b16 %v296
      %v329 = vunpack.c.l.b16 %v297
      %v330 = vunpack.c.l.b16 %v298
      %v331 = vunpack.c.l.b16 %v299
      %v332 = vunpack.c.l.b16 %v300
      %v333 = vunpack.c.l.b16 %v301
      %v334 = vunpack.c.l.b16 %v302
      %v335 = vunpack.c.l.b16 %v303
      %v336 = vunpack.c.l.b16 %v304
      %v337 = vunpack.c.l.b16 %v305
      %v338 = vpack.c.b16 %v323, %v322
      %v339 = vpack.c.b16 %v325, %v324
      %v340 = vpack.c.b16 %v327, %v326
      %v341 = vpack.c.b16 %v329, %v328
      %v342 = vpack.c.b16 %v331, %v330
      %v343 = vpack.c.b16 %v333, %v332
      %v344 = vpack.c.b16 %v335, %v334
      %v345 = vpack.c.b16 %v337, %v336
      %354 = vmatprep.subr.bf16.mxu0 0
      %355 = vmatpush1.bf16.msra.mxu0 %v338
      %356 = vmatprep.subr.bf16.mxu0 0
      %357 = vmatpush1.bf16.msra.mxu0 %v339
      %358 = vmatprep.subr.bf16.mxu0 0
      %359 = vmatpush1.bf16.msra.mxu0 %v340
      %360 = vmatprep.subr.bf16.mxu0 0
      %361 = vmatpush1.bf16.msra.mxu0 %v341
      %362 = vmatprep.subr.bf16.mxu0 0
      %363 = vmatpush1.bf16.msra.mxu0 %v342
      %364 = vmatprep.subr.bf16.mxu0 0
      %365 = vmatpush1.bf16.msra.mxu0 %v343
      %366 = vmatprep.subr.bf16.mxu0 0
      %367 = vmatpush1.bf16.msra.mxu0 %v344
      %368 = vmatprep.subr.bf16.mxu0 0
      %369 = vmatpush1.bf16.msra.mxu0 %v345
      %370 = vmatprep.subr.bf16.mxu0 0
      %371 = vmatpush1.bf16.msra.mxu0 0
      %372 = vmatprep.subr.bf16.mxu0 0
      %373 = vmatpush1.bf16.msra.mxu0 0
      %374 = vmatprep.subr.bf16.mxu0 0
      %375 = vmatpush1.bf16.msra.mxu0 0
      %376 = vmatprep.subr.bf16.mxu0 0
      %377 = vmatpush1.bf16.msra.mxu0 0
      %378 = vmatprep.subr.bf16.mxu0 0
      %379 = vmatpush1.bf16.msra.mxu0 0
      %380 = vmatprep.subr.bf16.mxu0 0
      %381 = vmatpush1.bf16.msra.mxu0 0
      %382 = vmatprep.subr.bf16.mxu0 0
      %383 = vmatpush1.bf16.msra.mxu0 0
      %384 = vmatprep.subr.bf16.mxu0 0
      %385 = vmatpush1.bf16.msra.mxu0 0
      %386 = vmatprep.mubr.bf16.mxu0 0
      %387 = vmatmul.mubr.bf16.gmra.mrb[0].mxu0 %v289
      %v388 = vpop.f32.mrb[0].mxu0
      %v389 = vadd.f32 0.0, %v388
      %v390 = vpop.f32.mrb[0].mxu0
      %v391 = vpop.f32.mrb[0].mxu0
      %v392 = vadd.f32 0.0, %v391
      %v393 = vpop.f32.mrb[0].mxu0
      %394 = vdwg.mxu0
      %v395 = vld [vmem:[%s5] sm:$0x1]
      %v396 = vld [vmem:[%s6] sm:$0x1]
      %v397 = vadd.f32 %v389, %v392
      %v398 = vrot.slane %v397, 4
      %v399 = vadd.f32 %v397, %v398
      %v400 = vrot.slane %v399, 2
      %v401 = vadd.f32 %v399, %v400
      %v402 = vrot.slane %v401, 1
      %v403 = vadd.f32 %v401, %v402
      %v404 = vmul.f32 %v403, 0.25
      %v405 = vsub.f32 %v389, %v404
      %v406 = vsub.f32 %v392, %v404
      %v407 = vmul.f32 %v405, %v123
      %v408 = vmul.f32 %v406, %v124
      %v409 = vmul.f32 %v407, %v407
      %v410 = vmul.f32 %v408, %v408
      %v411 = vadd.f32 %v409, %v410
      %v412 = vrot.slane %v411, 4
      %v413 = vadd.f32 %v411, %v412
      %v414 = vrot.slane %v413, 2
      %v415 = vadd.f32 %v413, %v414
      %v416 = vrot.slane %v415, 1
      %v417 = vadd.f32 %v415, %v416
      %v418 = vmul.f32 %v417, 0.25
      %v419 = vadd.f32 %v418, 1e-05
      %v420 = vrsqrt.pop %v419
      %v421 = vmul.f32 %v395, %v420
      %v423 = vlaneseq
      %v424 = vshrl.u32 %v423, 7
      %v425 = vsub.s32 0, %v424
      %v426 = vrot.slane %v421, %v425
      %v428 = vmul.f32 %v405, %v426
      %v429 = vmul.f32 %v406, %v426
      %v431 = vlaneseq
      %v432 = vshrl.u32 %v431, 7
      %v433 = vsub.s32 0, %v432
      %v434 = vrot.slane %v396, %v433
      %v436 = vadd.f32 %v428, %v434
      %v437 = vadd.f32 %v429, %v434
      %v438 = vmax.f32 %v436, 0.0
      %v439 = vmax.f32 %v437, 0.0
      %v440 = vpack.c.bf16 %v439, %v438
      %441 = vst [vmem:[#allocation2] sm:$0xff] %v440
    $region57: #{tpu_custom_call.1} parent=1 // pred_fallthru
      _
    %v442 = vld [vmem:[#allocation9] sm:$0xff]
    %v443 = vld [vmem:[#allocation9 + $0x8] sm:$0xff]
    %v444 = vld [vmem:[#allocation9 + $0x10] sm:$0xff]
    %v445 = vld [vmem:[#allocation9 + $0x18] sm:$0xff]
    %v446 = vld [vmem:[#allocation9 + $0x20] sm:$0xff]
    %v447 = vld [vmem:[#allocation9 + $0x28] sm:$0xff]
    %v448 = vld [vmem:[#allocation9 + $0x30] sm:$0xff]
    %v449 = vld [vmem:[#allocation9 + $0x38] sm:$0xff]
    %v450 = vld [vmem:[#allocation9 + $0x40] sm:$0xff]
    %v451 = vld [vmem:[#allocation9 + $0x48] sm:$0xff]
    %v452 = vld [vmem:[#allocation9 + $0x50] sm:$0xff]
    %v453 = vld [vmem:[#allocation9 + $0x58] sm:$0xff]
    %v454 = vld [vmem:[#allocation9 + $0x60] sm:$0xff]
    %v455 = vld [vmem:[#allocation9 + $0x68] sm:$0xff]
    %v456 = vld [vmem:[#allocation9 + $0x70] sm:$0xff]
    %v457 = vld [vmem:[#allocation9 + $0x78] sm:$0xff]
    %v458 = vld [vmem:[#allocation9 + $0x80] sm:$0xff]
    %v459 = vld [vmem:[#allocation9 + $0x88] sm:$0xff]
    %v460 = vld [vmem:[#allocation9 + $0x90] sm:$0xff]
    %v461 = vld [vmem:[#allocation9 + $0x98] sm:$0xff]
    %v462 = vld [vmem:[#allocation9 + $0xa0] sm:$0xff]
    %v463 = vld [vmem:[#allocation9 + $0xa8] sm:$0xff]
    %v464 = vld [vmem:[#allocation9 + $0xb0] sm:$0xff]
    %v465 = vld [vmem:[#allocation9 + $0xb8] sm:$0xff]
    %v466 = vld [vmem:[#allocation9 + $0xc0] sm:$0xff]
    %v467 = vld [vmem:[#allocation9 + $0xc8] sm:$0xff]
    %v468 = vld [vmem:[#allocation9 + $0xd0] sm:$0xff]
    %v469 = vld [vmem:[#allocation9 + $0xd8] sm:$0xff]
    %v470 = vld [vmem:[#allocation9 + $0xe0] sm:$0xff]
    %v471 = vld [vmem:[#allocation9 + $0xe8] sm:$0xff]
    %v472 = vld [vmem:[#allocation9 + $0xf0] sm:$0xff]
    %v473 = vld [vmem:[#allocation9 + $0xf8] sm:$0xff]
    %v474 = vld [vmem:[#allocation2] sm:$0xff]
    %v475 = vld [vmem:[%s110] sm:$0xf]
    %v477 = vlaneseq
    %v478 = vshrl.u32 %v477, 7
    %v479 = vsub.s32 0, %v478
    %v480 = vrot.slane %v475, %v479
    %v481 = vlaneseq
    %v482 = vshrl.u32 %v481, 7
    %v483 = vsub.s32 1, %v482
    %v484 = vrot.slane %v475, %v483
    %v485 = vlaneseq
    %v486 = vshrl.u32 %v485, 7
    %v487 = vsub.s32 2, %v486
    %v488 = vrot.slane %v475, %v487
    %v489 = vlaneseq
    %v490 = vshrl.u32 %v489, 7
    %v491 = vsub.s32 3, %v490
    %v492 = vrot.slane %v475, %v491
    %v529 = vunpack.c.l.b16 %v442
    %v530 = vunpack.c.h.b16 %v442
    %v531 = vunpack.c.l.b16 %v443
    %v532 = vunpack.c.h.b16 %v443
    %v533 = vunpack.c.l.b16 %v444
    %v534 = vunpack.c.h.b16 %v444
    %v535 = vunpack.c.l.b16 %v445
    %v536 = vunpack.c.h.b16 %v445
    %v537 = vunpack.c.l.b16 %v446
    %v538 = vunpack.c.h.b16 %v446
    %v539 = vunpack.c.l.b16 %v447
    %v540 = vunpack.c.h.b16 %v447
    %v541 = vunpack.c.l.b16 %v448
    %v542 = vunpack.c.h.b16 %v448
    %v543 = vunpack.c.l.b16 %v449
    %v544 = vunpack.c.h.b16 %v449
    %v545 = vunpack.c.l.b16 %v450
    %v546 = vunpack.c.h.b16 %v450
    %v547 = vunpack.c.l.b16 %v451
    %v548 = vunpack.c.h.b16 %v451
    %v549 = vunpack.c.l.b16 %v452
    %v550 = vunpack.c.h.b16 %v452
    %v551 = vunpack.c.l.b16 %v453
    %v552 = vunpack.c.h.b16 %v453
    %v553 = vunpack.c.l.b16 %v454
    %v554 = vunpack.c.h.b16 %v454
    %v555 = vunpack.c.l.b16 %v455
    %v556 = vunpack.c.h.b16 %v455
    %v557 = vunpack.c.l.b16 %v456
    %v558 = vunpack.c.h.b16 %v456
    %v559 = vunpack.c.l.b16 %v457
    %v560 = vunpack.c.h.b16 %v457
    %v561 = vunpack.c.l.b16 %v458
    %v562 = vunpack.c.h.b16 %v458
    %v563 = vunpack.c.l.b16 %v459
    %v564 = vunpack.c.h.b16 %v459
    %v565 = vunpack.c.l.b16 %v460
    %v566 = vunpack.c.h.b16 %v460
    %v567 = vunpack.c.l.b16 %v461
    %v568 = vunpack.c.h.b16 %v461
    %v569 = vunpack.c.l.b16 %v462
    %v570 = vunpack.c.h.b16 %v462
    %v571 = vunpack.c.l.b16 %v463
    %v572 = vunpack.c.h.b16 %v463
    %v573 = vunpack.c.l.b16 %v464
    %v574 = vunpack.c.h.b16 %v464
    %v575 = vunpack.c.l.b16 %v465
    %v576 = vunpack.c.h.b16 %v465
    %v577 = vunpack.c.l.b16 %v466
    %v578 = vunpack.c.h.b16 %v466
    %v579 = vunpack.c.l.b16 %v467
    %v580 = vunpack.c.h.b16 %v467
    %v581 = vunpack.c.l.b16 %v468
    %v582 = vunpack.c.h.b16 %v468
    %v583 = vunpack.c.l.b16 %v469
    %v584 = vunpack.c.h.b16 %v469
    %v585 = vunpack.c.l.b16 %v470
    %v586 = vunpack.c.h.b16 %v470
    %v587 = vunpack.c.l.b16 %v471
    %v588 = vunpack.c.h.b16 %v471
    %v589 = vunpack.c.l.b16 %v472
    %v590 = vunpack.c.h.b16 %v472
    %v591 = vunpack.c.l.b16 %v473
    %v592 = vunpack.c.h.b16 %v473
    %v593 = vpack.c.b16 %v533, %v529
    %v594 = vpack.c.b16 %v534, %v530
    %v595 = vpack.c.b16 %v535, %v531
    %v596 = vpack.c.b16 %v536, %v532
    %v597 = vpack.c.b16 %v541, %v537
    %v598 = vpack.c.b16 %v542, %v538
    %v599 = vpack.c.b16 %v543, %v539
    %v600 = vpack.c.b16 %v544, %v540
    %v601 = vpack.c.b16 %v549, %v545
    %v602 = vpack.c.b16 %v550, %v546
    %v603 = vpack.c.b16 %v551, %v547
    %v604 = vpack.c.b16 %v552, %v548
    %v605 = vpack.c.b16 %v557, %v553
    %v606 = vpack.c.b16 %v558, %v554
    %v607 = vpack.c.b16 %v559, %v555
    %v608 = vpack.c.b16 %v560, %v556
    %v609 = vpack.c.b16 %v565, %v561
    %v610 = vpack.c.b16 %v566, %v562
    %v611 = vpack.c.b16 %v567, %v563
    %v612 = vpack.c.b16 %v568, %v564
    %v613 = vpack.c.b16 %v573, %v569
    %v614 = vpack.c.b16 %v574, %v570
    %v615 = vpack.c.b16 %v575, %v571
    %v616 = vpack.c.b16 %v576, %v572
    %v617 = vpack.c.b16 %v581, %v577
    %v618 = vpack.c.b16 %v582, %v578
    %v619 = vpack.c.b16 %v583, %v579
    %v620 = vpack.c.b16 %v584, %v580
    %v621 = vpack.c.b16 %v589, %v585
    %v622 = vpack.c.b16 %v590, %v586
    %v623 = vpack.c.b16 %v591, %v587
    %v624 = vpack.c.b16 %v592, %v588
    %657 = vmatprep.subr.bf16.mxu0 %v594
    %658 = vmatpush1.bf16.msra.mxu0 %v593
    %659 = vmatprep.subr.bf16.mxu0 %v598
    %660 = vmatpush1.bf16.msra.mxu0 %v597
    %661 = vmatprep.subr.bf16.mxu0 %v602
    %662 = vmatpush1.bf16.msra.mxu0 %v601
    %663 = vmatprep.subr.bf16.mxu0 %v606
    %664 = vmatpush1.bf16.msra.mxu0 %v605
    %665 = vmatprep.subr.bf16.mxu0 %v610
    %666 = vmatpush1.bf16.msra.mxu0 %v609
    %667 = vmatprep.subr.bf16.mxu0 %v614
    %668 = vmatpush1.bf16.msra.mxu0 %v613
    %669 = vmatprep.subr.bf16.mxu0 %v618
    %670 = vmatpush1.bf16.msra.mxu0 %v617
    %671 = vmatprep.subr.bf16.mxu0 %v622
    %672 = vmatpush1.bf16.msra.mxu0 %v621
    %673 = vmatprep.subr.bf16.mxu0 0
    %674 = vmatpush1.bf16.msra.mxu0 0
    %675 = vmatprep.subr.bf16.mxu0 0
    %676 = vmatpush1.bf16.msra.mxu0 0
    %677 = vmatprep.subr.bf16.mxu0 0
    %678 = vmatpush1.bf16.msra.mxu0 0
    %679 = vmatprep.subr.bf16.mxu0 0
    %680 = vmatpush1.bf16.msra.mxu0 0
    %681 = vmatprep.subr.bf16.mxu0 0
    %682 = vmatpush1.bf16.msra.mxu0 0
    %683 = vmatprep.subr.bf16.mxu0 0
    %684 = vmatpush1.bf16.msra.mxu0 0
    %685 = vmatprep.subr.bf16.mxu0 0
    %686 = vmatpush1.bf16.msra.mxu0 0
    %687 = vmatprep.subr.bf16.mxu0 0
    %688 = vmatpush1.bf16.msra.mxu0 0
    %689 = vmatprep.mubr.bf16.mxu0 0
    %690 = vmatmul.mubr.bf16.gmra.mrb[0].mxu0 %v474
    %v691 = vpop.f32.mrb[0].mxu0
    %v692 = vadd.f32 %v480, %v691
    %v693 = vpop.f32.mrb[0].mxu0
    %v694 = vadd.f32 %v484, %v693
    %v695 = vpop.f32.mrb[0].mxu0
    %v696 = vadd.f32 %v480, %v695
    %v697 = vpop.f32.mrb[0].mxu0
    %v698 = vadd.f32 %v484, %v697
    %699 = vdwg.mxu0
    %700 = vmatprep.subr.bf16.mxu0 %v596
    %701 = vmatpush1.bf16.msra.mxu0 %v595
    %702 = vmatprep.subr.bf16.mxu0 %v600
    %703 = vmatpush1.bf16.msra.mxu0 %v599
    %704 = vmatprep.subr.bf16.mxu0 %v604
    %705 = vmatpush1.bf16.msra.mxu0 %v603
    %706 = vmatprep.subr.bf16.mxu0 %v608
    %707 = vmatpush1.bf16.msra.mxu0 %v607
    %708 = vmatprep.subr.bf16.mxu0 %v612
    %709 = vmatpush1.bf16.msra.mxu0 %v611
    %710 = vmatprep.subr.bf16.mxu0 %v616
    %711 = vmatpush1.bf16.msra.mxu0 %v615
    %712 = vmatprep.subr.bf16.mxu0 %v620
    %713 = vmatpush1.bf16.msra.mxu0 %v619
    %714 = vmatprep.subr.bf16.mxu0 %v624
    %715 = vmatpush1.bf16.msra.mxu0 %v623
    %716 = vmatprep.subr.bf16.mxu0 0
    %717 = vmatpush1.bf16.msra.mxu0 0
    %718 = vmatprep.subr.bf16.mxu0 0
    %719 = vmatpush1.bf16.msra.mxu0 0
    %720 = vmatprep.subr.bf16.mxu0 0
    %721 = vmatpush1.bf16.msra.mxu0 0
    %722 = vmatprep.subr.bf16.mxu0 0
    %723 = vmatpush1.bf16.msra.mxu0 0
    %724 = vmatprep.subr.bf16.mxu0 0
    %725 = vmatpush1.bf16.msra.mxu0 0
    %726 = vmatprep.subr.bf16.mxu0 0
    %727 = vmatpush1.bf16.msra.mxu0 0
    %728 = vmatprep.subr.bf16.mxu0 0
    %729 = vmatpush1.bf16.msra.mxu0 0
    %730 = vmatprep.subr.bf16.mxu0 0
    %731 = vmatpush1.bf16.msra.mxu0 0
    %732 = vmatprep.mubr.bf16.mxu0 0
    %733 = vmatmul.mubr.bf16.gmra.mrb[0].mxu0 %v474
    %v734 = vpop.f32.mrb[0].mxu0
    %v735 = vadd.f32 %v488, %v734
    %v736 = vpop.f32.mrb[0].mxu0
    %v737 = vadd.f32 %v492, %v736
    %v738 = vpop.f32.mrb[0].mxu0
    %v739 = vadd.f32 %v488, %v738
    %v740 = vpop.f32.mrb[0].mxu0
    %v741 = vadd.f32 %v492, %v740
    %742 = vdwg.mxu0
    %743 = vst [vmem:[#allocation11] sm:$0xff] %v692
    %744 = vst [vmem:[#allocation11 + $0x8] sm:$0xff] %v694
    %745 = vst [vmem:[#allocation11 + $0x10] sm:$0xff] %v735
    %746 = vst [vmem:[#allocation11 + $0x18] sm:$0xff] %v737
    %747 = vst [vmem:[#allocation11 + $0x20] sm:$0xff] %v696
    %748 = vst [vmem:[#allocation11 + $0x28] sm:$0xff] %v698
    %749 = vst [vmem:[#allocation11 + $0x30] sm:$0xff] %v739
    %750 = vst [vmem:[#allocation11 + $0x38] sm:$0xff] %v741
    // Predicated region
    $region58: #{tpu_custom_call.1} parent=1 // pred_check
      _
    $region59: #{tpu_custom_call.1} parent=1 // pred_check_branch
      %752 = sbr.rel (0) target = $region61
    $region60: #{tpu_custom_call.1} parent=1 // pred_region
      %s753 = sadd.s32 0, 0
      %s754 = smul.u32 4, %s753
      %s756 = ssub.s32 1024, 1024
      %757 = vsyncadd [#allocation5], %s756
      %s758 = smul.addr %s754, 128
      %s759 = scalar_lea.hbm %s9, %s758
      %s760 = sshll.u32 [#allocation11], 4
      %s761 = int_to_ptr.vmem [resolvable:$true] %s760
      %766 = dma.vmem_to_hbm [thread:$0]  %s761, 1024, %s759, [#allocation5], 512, 512, 32
    $region61: #{tpu_custom_call.1} parent=1 // pred_fallthru
      _
    // Predicated region
    $region62: #{tpu_custom_call.1} parent=1 // pred_check
      _
    $region63: #{tpu_custom_call.1} parent=1 // pred_check_branch
      %768 = sbr.rel (0) target = $region65
    $region64: #{tpu_custom_call.1} parent=1 // pred_region
      %769 = dma.done [#allocation5], 1024
    $region65: #{tpu_custom_call.1} parent=1 // pred_fallthru
      _
    %770 = vsyncpa [#allocation4], 1
    %771 = vsyncpa [#allocation7], 1
    %772 = vsyncpa [#allocation10], 1
    %773 = vsyncpa [#allocation5], 1

</llo_original>
